<compile_context>
chip_gen: v7x
topology: tpu7x:2x2x1
jax: 0.10.0
libtpu: 0.0.40
codegen_flags: <defaults>
</compile_context>

<pallas_src>
import math

import jax
import jax.numpy as jnp
from jax.experimental import pallas as pl
from jax.experimental.pallas import tpu as pltpu


def _build_pe(d_model: int, seq_len: int) -> jnp.ndarray:
    # NOTE: the reference __init__ calls torch.sin(position, div_term), which
    # (mis)uses the `out=` positional arg.  We implement the clearly intended
    # sinusoidal encoding sin(position * div_term) / cos(position * div_term),
    # keeping the (nonstandard) div_term = exp(arange(0,d,2) * -log(10000/d)).
    position = jnp.arange(seq_len, dtype=jnp.float32)[:, None]            # (S_max, 1)
    div_term = jnp.exp(jnp.arange(0, d_model, 2, dtype=jnp.float32)
                       * -math.log(10000.0 / d_model))                    # (D/2,)
    pe = jnp.zeros((seq_len, d_model), dtype=jnp.float32)
    pe = pe.at[:, 0::2].set(jnp.sin(position * div_term))
    pe = pe.at[:, 1::2].set(jnp.cos(position * div_term))
    return pe[None]                                                       # (1, S_max, D)


def _add_kernel(x_ref, pe_ref, o_ref):
    # x_ref: (TM, LD) row tile; pe_ref: (1, LD) broadcast row.
    o_ref[...] = x_ref[...] + pe_ref[...]


def _add_dropout_kernel(x_ref, pe_ref, m_ref, o_ref):
    # m_ref is a keep-mask already scaled by 1/keep_prob -> one multiply/elem.
    o_ref[...] = ((x_ref[...] + pe_ref[...]) * m_ref[...]).astype(o_ref.dtype)


class PositionalEncoding:
    def __init__(self, d_model: int, seq_len: int, dropout: float) -> None:
        self.d_model = d_model
        self.seq_len = seq_len
        self.p = float(dropout)
        self.pe = _build_pe(d_model, seq_len)   # (1, seq_len, d_model)

    @staticmethod
    def _layout(B, S, D, itemsize):
        """Choose a lane-dense (rows, LD) view of the flattened (B*S*D,) data
        plus a row-tile TM sized for the VMEM pipeline."""
        total = B * S * D
        ld = D
        # Make the last dim a multiple of 128 if the total allows it (the pe
        # row pattern repeats every D elements, so LD just has to be k*D).
        if ld % 128 != 0:
            r = math.lcm(ld, 128) // ld
            if (total // ld) % r == 0:
                ld *= r
        # Widen further toward ~512 lanes for denser, longer stores.
        while ld < 512 and (total // ld) % 2 == 0:
            ld *= 2
        rows = total // ld

        # Row tile: keep one block around <= 1 MiB so 2x(in+out)(+mask) buffers
        # stay well under every generation's scoped-VMEM default (16 MiB v5e).
        max_block_bytes = 1 << 20
        tm = min(rows, max(1, max_block_bytes // (ld * itemsize)))
        if tm < rows:
            tm = max(8, (tm // 8) * 8)   # (8,128) tiling rule when not full
        return rows, ld, tm

    def __call__(self, x, *, training: bool = False, rng=None):
        B, S, D = x.shape
        assert D == self.d_model
        assert S < self.seq_len, "reference indexes pe[:, x.shape[1], :] -> needs S < seq_len"

        itemsize = jnp.dtype(x.dtype).itemsize
        rows, ld, tm = self._layout(B, S, D, itemsize)
        grid = (pl.cdiv(rows, tm),)

        # Exact reference semantics: the single pe row at index S, broadcast.
        pe_row = self.pe[0, S, :]                                   # (D,)
        pe_tile = jnp.tile(pe_row, ld // D)[None, :].astype(x.dtype)  # (1, ld)
        x2 = x.reshape(rows, ld)

        x_spec = pl.BlockSpec((tm, ld), lambda i: (i, 0))
        pe_spec = pl.BlockSpec((1, ld), lambda i: (0, 0))
        out_spec = pl.BlockSpec((tm, ld), lambda i: (i, 0))
        out_shape = jax.ShapeDtypeStruct((rows, ld), x.dtype)
        cparams = pltpu.CompilerParams(dimension_semantics=("parallel",))

        if (not training) or self.p == 0.0:
            cost = pl.CostEstimate(flops=rows * ld, transcendentals=0,
                                   bytes_accessed=(2 * rows * ld + ld) * itemsize)
            y2 = pl.pallas_call(
                _add_kernel,
                out_shape=out_shape,
                grid=grid,
                in_specs=[x_spec, pe_spec],
                out_specs=out_spec,
                compiler_params=cparams,
                cost_estimate=cost,
            )(x2, pe_tile)
            return y2.reshape(B, S, D)

        # Training path: dropout as a fused pre-scaled-mask multiply.
        # TODO(synk): an in-kernel pltpu.prng_* mask would avoid the extra HBM
        # read of the mask, but the hardware PRNG has no CPU/interpret lowering.
        keep_prob = 1.0 - self.p
        if rng is None:
            rng = jax.random.PRNGKey(0)
        keep = jax.random.bernoulli(rng, keep_prob, (rows, ld))
        mask = keep.astype(x.dtype) * jnp.asarray(1.0 / keep_prob, dtype=x.dtype)

        cost = pl.CostEstimate(flops=2 * rows * ld, transcendentals=0,
                               bytes_accessed=(3 * rows * ld + ld) * itemsize)
        y2 = pl.pallas_call(
            _add_dropout_kernel,
            out_shape=out_shape,
            grid=grid,
            in_specs=[x_spec, pe_spec, x_spec],
            out_specs=out_spec,
            compiler_params=cparams,
            cost_estimate=cost,
        )(x2, pe_tile, mask)
        return y2.reshape(B, S, D)


if __name__ == "__main__":
    key = jax.random.PRNGKey(0)
    B, S, D, SEQ_LEN = 2, 8, 32, 16
    x = jax.random.normal(key, (B, S, D), dtype=jnp.float32)

    mod = PositionalEncoding(d_model=D, seq_len=SEQ_LEN, dropout=0.1)

    # Eval mode (dropout = identity): check against pure-JAX reference.
    y = mod(x, training=False)
    jax.block_until_ready(y)
    ref = x + mod.pe[:, S, :]
    assert y.shape == (B, S, D)
    assert jnp.allclose(y, ref, atol=1e-6), "mismatch vs reference"

    # Exercise the fused dropout (training) path once as well.
    y_tr = mod(x, training=True, rng=jax.random.PRNGKey(123))
    jax.block_until_ready(y_tr)
    assert y_tr.shape == (B, S, D)
    assert bool(jnp.all(jnp.isfinite(y_tr)))

    print("KERNEL_OK")
</pallas_src>

<mosaic_0001>
module attributes {stable_mosaic.version = 11 : i64} {
  func.func @_add_kernel(%arg0: i32, %arg1: memref<1x512xf32, #tpu.memory_space<vmem>>, %arg2: memref<1x512xf32, #tpu.memory_space<vmem>>, %arg3: memref<1x512xf32, #tpu.memory_space<vmem>>) attributes {dimension_semantics = [#tpu.dimension_semantics<parallel>], iteration_bounds = array<i64: 1>, scalar_prefetch = 0 : i64, scratch_operands = 0 : i64, tpu.core_type = #tpu.core_type<tc>, window_params = [{transform_indices = @transform_0, window_bounds = array<i64: 1, 512>}, {pipeline_mode = #tpu.pipeline_mode<synchronous>, transform_indices = @transform_1, window_bounds = array<i64: 1, 512>}, {transform_indices = @transform_2, window_bounds = array<i64: 1, 512>}]} {
    %c0 = arith.constant 0 : index
    %c0_0 = arith.constant 0 : index
    %0 = vector.load %arg1[%c0, %c0_0] : memref<1x512xf32, #tpu.memory_space<vmem>>, vector<1x512xf32>
    %c0_1 = arith.constant 0 : index
    %c0_2 = arith.constant 0 : index
    %1 = vector.load %arg2[%c0_1, %c0_2] : memref<1x512xf32, #tpu.memory_space<vmem>>, vector<1x512xf32>
    %2 = arith.addf %0, %1 : vector<1x512xf32>
    %c0_3 = arith.constant 0 : index
    %c0_4 = arith.constant 0 : index
    %3 = vector.load %arg3[%c0_3, %c0_4] : memref<1x512xf32, #tpu.memory_space<vmem>>, vector<1x512xf32>
    tpu.vector_store %arg3[%c0_3, %c0_4], %2 {strides = array<i32>} : memref<1x512xf32, #tpu.memory_space<vmem>>, vector<1x512xf32>,
    return
  }
  func.func @transform_0(%arg0: i32) -> (i32, i32) {
    %c0_i32 = arith.constant 0 : i32
    %c0_i32_0 = arith.constant 0 : i32
    return %arg0, %c0_i32 : i32, i32
  }
  func.func @transform_1(%arg0: i32) -> (i32, i32) {
    %c0_i32 = arith.constant 0 : i32
    %c0_i32_0 = arith.constant 0 : i32
    %c0_i32_1 = arith.constant 0 : i32
    return %c0_i32, %c0_i32_0 : i32, i32
  }
  func.func @transform_2(%arg0: i32) -> (i32, i32) {
    %c0_i32 = arith.constant 0 : i32
    %c0_i32_0 = arith.constant 0 : i32
    return %arg0, %c0_i32 : i32, i32
  }
}

</mosaic_0001>

<llo_original>
// kernel: tpu_custom_call.1
$region0: #{tpu_custom_call.1}
  #allocation0 [shape = 'u32[]', space=smem, size = 0x4, offset = 0x4, fixed_abs, tag = 'smem constant byte address 0x4 - core index']
  #allocation1 [shape = 'u32[144,128]{1,0:T(1,128)}', space=vmem, size = 0x12000, scoped, tag = 'internal scratch']
  %s0 = inlined_call_operand.hbm [shape: f32[1,512], index: 0, kind: input, shape index: {}]
  %s1 = inlined_call_operand.hbm [shape: f32[1,512], index: 1, kind: input, shape index: {}]
  %s2 = inlined_call_operand.hbm [shape: f32[1,512], index: 2, kind: output, shape index: {}]
  %s3 = sld [smem:[#allocation0]]
  $region26: #{tpu_custom_call.1} parent=0
    _
  %s5 = ssub.s32 1, %s3
  %s6 = scalar_select 0, %s5, %s3
  $region1: #{tpu_custom_call.1} parent=0
    #allocation2 [shape = 'u8[2048]{0}', space=vmem, size = 0x800, scoped, tag = 'input window, operand 0, single buffered']
    #allocation3 [shape = 's32[1]{0}', space=sflag, size = 0x4, scoped, tag = 'scoped memory for tpu_custom_call.1']
    #allocation4 [shape = 's32[1]{0}', space=sflag, size = 0x4, scoped, tag = 'scoped memory for tpu_custom_call.1']
    #allocation5 [shape = 'u8[2048]{0}', space=vmem, size = 0x800, scoped, tag = 'input window, operand 1, single buffered']
    #allocation6 [shape = 's32[1]{0}', space=sflag, size = 0x4, scoped, tag = 'scoped memory for tpu_custom_call.1']
    #allocation7 [shape = 'u8[2048]{0}', space=vmem, size = 0x800, scoped, tag = 'output window, operand 0, single buffered']
    %7 = vsyncpa [#allocation3], 0
    %8 = vsyncpa [#allocation6], 0
    %9 = vsyncpa [#allocation4], 0
    // Predicated region
    $region2: #{tpu_custom_call.1} parent=1 // pred_check
      _
    $region3: #{tpu_custom_call.1} parent=1 // pred_check_branch
      %11 = sbr.rel (0) target = $region5
    $region4: #{tpu_custom_call.1} parent=1 // pred_region
      %s13 = ssub.s32 64, 64
      %14 = vsyncadd [#allocation3], %s13
      %s16 = sshll.u32 [#allocation2], 4
      %s17 = int_to_ptr.vmem [resolvable:$true] %s16
      %19 = dma.hbm_to_vmem [thread:$0]  %s0, 64, %s17, [#allocation3]
    $region5: #{tpu_custom_call.1} parent=1 // pred_fallthru
      _
    // Predicated region
    $region6: #{tpu_custom_call.1} parent=1 // pred_check
      _
    $region7: #{tpu_custom_call.1} parent=1 // pred_check_branch
      %21 = sbr.rel (0) target = $region9
    $region8: #{tpu_custom_call.1} parent=1 // pred_region
      %s23 = ssub.s32 64, 64
      %24 = vsyncadd [#allocation6], %s23
      %s26 = sshll.u32 [#allocation5], 4
      %s27 = int_to_ptr.vmem [resolvable:$true] %s26
      %29 = dma.hbm_to_vmem [thread:$0]  %s1, 64, %s27, [#allocation6]
    $region9: #{tpu_custom_call.1} parent=1 // pred_fallthru
      _
    // Predicated region
    $region10: #{tpu_custom_call.1} parent=1 // pred_check
      _
    $region11: #{tpu_custom_call.1} parent=1 // pred_check_branch
      %31 = sbr.rel (0) target = $region13
    $region12: #{tpu_custom_call.1} parent=1 // pred_region
      %32 = dma.done [#allocation3], 64
    $region13: #{tpu_custom_call.1} parent=1 // pred_fallthru
      _
    // Predicated region
    $region14: #{tpu_custom_call.1} parent=1 // pred_check
      _
    $region15: #{tpu_custom_call.1} parent=1 // pred_check_branch
      %34 = sbr.rel (0) target = $region17
    $region16: #{tpu_custom_call.1} parent=1 // pred_region
      %35 = dma.done [#allocation6], 64
    $region17: #{tpu_custom_call.1} parent=1 // pred_fallthru
      _
    %v36 = vld [vmem:[#allocation2] sm:$0xf]
    %v37 = vld [vmem:[#allocation5] sm:$0xf]
    %v38 = vadd.f32 %v36, %v37
    %v39 = vlaneseq
    %vm40 = vcmp.ge.s32.totalorder %v39, 0
    %vm41 = vcmp.lt.s32.totalorder %v39, 512
    %vm42 = vmand %vm40, %vm41
    %43 = vst.msk [vmem:[#allocation7] sm:$0xf] %vm42, %v38
    // Predicated region
    $region18: #{tpu_custom_call.1} parent=1 // pred_check
      _
    $region19: #{tpu_custom_call.1} parent=1 // pred_check_branch
      %45 = sbr.rel (0) target = $region21
    $region20: #{tpu_custom_call.1} parent=1 // pred_region
      %s47 = ssub.s32 64, 64
      %48 = vsyncadd [#allocation4], %s47
      %s50 = sshll.u32 [#allocation7], 4
      %s51 = int_to_ptr.vmem [resolvable:$true] %s50
      %53 = dma.vmem_to_hbm [thread:$0]  %s51, 64, %s2, [#allocation4]
    $region21: #{tpu_custom_call.1} parent=1 // pred_fallthru
      _
    // Predicated region
    $region22: #{tpu_custom_call.1} parent=1 // pred_check
      _
    $region23: #{tpu_custom_call.1} parent=1 // pred_check_branch
      %55 = sbr.rel (0) target = $region25
    $region24: #{tpu_custom_call.1} parent=1 // pred_region
      %56 = dma.done [#allocation4], 64
    $region25: #{tpu_custom_call.1} parent=1 // pred_fallthru
      _
    %57 = vsyncpa [#allocation3], 1
    %58 = vsyncpa [#allocation6], 1
    %59 = vsyncpa [#allocation4], 1

</llo_original>
